<compile_context>
chip_gen: v7x
topology: tpu7x:2x2x1
jax: 0.10.0
libtpu: 0.0.40
codegen_flags: <defaults>
</compile_context>

<pallas_src>
import math

import jax
import jax.numpy as jnp
from jax.experimental import pallas as pl
from jax.experimental.pallas import tpu as pltpu


# ----------------------------------------------------------------------------
# PE table construction (mirrors the PyTorch __init__, including its quirk).
# ----------------------------------------------------------------------------
def make_positional_encoding(seq_len: int, dim_model: int, dtype=jnp.float32):
    position = jnp.arange(seq_len, dtype=jnp.float32)[:, None]           # (S, 1)
    div_term = jnp.exp(
        jnp.arange(0, dim_model, 2, dtype=jnp.float32)
        * (-math.log(10000.0) / dim_model))                              # (D//2,)
    even = jnp.sin(position * div_term)                                  # (S, D//2)
    pe = jnp.zeros((seq_len, dim_model), jnp.float32)
    # Reference assigns [:, 0::2] = sin(...) twice; odd columns stay zero.
    pe = pe.at[:, 0::2].set(even)
    return pe[None].astype(dtype)                                        # (1, S, D)


# ----------------------------------------------------------------------------
# Kernel: lane-dense broadcast add (pure VPU, no XLU/MXU work).
# ----------------------------------------------------------------------------
def _add_pe_kernel(x_ref, pe_ref, o_ref):
    # x_ref: (tb, tr), pe_ref: (1, tr) -> broadcasts over the batch rows.
    o_ref[...] = x_ref[...] + pe_ref[...]


# ----------------------------------------------------------------------------
# VMEM-aware tile selection.
# ----------------------------------------------------------------------------
_TARGET_TILE_BYTES = 3 * 1024 * 1024   # ~3 MiB/tile -> ~12 MiB double-buffered
_LANE = 128


def _choose_tiles(B: int, row: int, itemsize: int, target_bytes: int):
    """Pick (batch_tile, row_tile) for a (B, row) streaming add."""
    sub = {4: 8, 2: 16, 1: 32}.get(itemsize, 8)      # sublane packing per dtype

    # ---- row (lane) tile ----------------------------------------------------
    if row <= _LANE or row * itemsize * sub <= target_bytes:
        tr = row                                      # full row fits the budget
    else:
        max_tr = max(_LANE, (target_bytes // (sub * itemsize)) // _LANE * _LANE)
        tr = min(max_tr, (row // _LANE) * _LANE)      # multiple of 128
        # Prefer an exact divisor of `row` (avoids a ragged, masked last tile).
        t = tr
        while t >= _LANE:
            if row % t == 0:
                tr = t
                break
            t -= _LANE

    # ---- batch (sublane) tile -------------------------------------------------
    max_tb = max(1, target_bytes // (tr * itemsize))
    if B <= max_tb:
        tb = B                                        # whole batch in one tile
    else:
        tb = max(sub, (max_tb // sub) * sub)          # sublane-aligned
        t = tb
        while t >= sub:                               # prefer a divisor of B
            if B % t == 0:
                tb = t
                break
            t -= sub
        tb = min(tb, B)

    # Megacore (v7x): make sure there are >= 2 grid steps when B allows it.
    if pl.cdiv(row, tr) == 1 and pl.cdiv(B, tb) == 1 and B >= 2 * sub:
        tb = max(sub, ((B // 2) // sub) * sub)

    return tb, tr


# ----------------------------------------------------------------------------
# Forward wrapper:  y = x + pe_full[:, :S, :]   (dropout identity in eval mode)
# ----------------------------------------------------------------------------
@jax.jit
def positional_encoding_forward(x, pe_full):
    B, S, D = x.shape
    if S > pe_full.shape[1]:
        raise ValueError(
            f"sequence length {S} exceeds PE buffer length {pe_full.shape[1]}")

    row = S * D
    # Lane-dense flatten; under jit the PE slice/reshape/cast fuses with the call.
    x2 = x.reshape(B, row)
    pe2 = pe_full[:, :S, :].reshape(1, row).astype(x.dtype)

    itemsize = jnp.dtype(x.dtype).itemsize
    tb, tr = _choose_tiles(B, row, itemsize, _TARGET_TILE_BYTES)

    # Row-tile axis OUTER, batch-tile axis INNER: the PE chunk (which depends
    # only on the row-tile index) is DMA'd once per row tile, not per batch tile.
    grid = (pl.cdiv(row, tr), pl.cdiv(B, tb))

    out = pl.pallas_call(
        _add_pe_kernel,
        out_shape=jax.ShapeDtypeStruct((B, row), x.dtype),
        grid_spec=pltpu.PrefetchScalarGridSpec(
            num_scalar_prefetch=0,
            grid=grid,
            in_specs=[
                pl.BlockSpec((tb, tr), lambda j, i: (i, j)),   # x tile
                pl.BlockSpec((1, tr), lambda j, i: (0, j)),    # PE row chunk
            ],
            out_specs=pl.BlockSpec((tb, tr), lambda j, i: (i, j)),
        ),
        compiler_params=pltpu.CompilerParams(
            dimension_semantics=("parallel", "parallel"),      # v7x: 2 TCs
            vmem_limit_bytes=32 * 1024 * 1024,
        ),
    )(x2, pe2)

    return out.reshape(B, S, D)


# ----------------------------------------------------------------------------
# Demo / correctness check.
# ----------------------------------------------------------------------------
if __name__ == "__main__":
    B, S, D = 2, 8, 32       # batch, sequence (<= SEQ_LEN), model dim
    SEQ_LEN = 16             # PE buffer length (exercises the [:, :S, :] slice)

    key = jax.random.PRNGKey(0)
    x = jax.random.normal(key, (B, S, D), dtype=jnp.float32)

    pe_full = make_positional_encoding(SEQ_LEN, D)            # (1, SEQ_LEN, D)

    out = jax.block_until_ready(positional_encoding_forward(x, pe_full))

    # Pure-JAX reference of the module's forward (eval mode -> dropout identity).
    ref = x + pe_full[:, :S, :]

    max_err = float(jnp.max(jnp.abs(out - ref)))
    assert out.shape == (B, S, D) and out.dtype == jnp.float32
    assert jnp.allclose(out, ref, rtol=1e-6, atol=1e-6), f"max_err={max_err}"
    print("KERNEL_OK")
</pallas_src>

<mosaic_0001>
module attributes {stable_mosaic.version = 11 : i64} {
  func.func @_add_pe_kernel(%arg0: i32, %arg1: i32, %arg2: memref<2x256xf32, #tpu.memory_space<vmem>>, %arg3: memref<1x256xf32, #tpu.memory_space<vmem>>, %arg4: memref<2x256xf32, #tpu.memory_space<vmem>>) attributes {dimension_semantics = [#tpu.dimension_semantics<parallel>, #tpu.dimension_semantics<parallel>], iteration_bounds = array<i64: 1, 1>, scalar_prefetch = 0 : i64, scratch_operands = 0 : i64, tpu.core_type = #tpu.core_type<tc>, window_params = [{transform_indices = @transform_0, window_bounds = array<i64: 2, 256>}, {transform_indices = @transform_1, window_bounds = array<i64: 1, 256>}, {transform_indices = @transform_2, window_bounds = array<i64: 2, 256>}]} {
    %c0 = arith.constant 0 : index
    %c0_0 = arith.constant 0 : index
    %0 = vector.load %arg2[%c0, %c0_0] : memref<2x256xf32, #tpu.memory_space<vmem>>, vector<2x256xf32>
    %c0_1 = arith.constant 0 : index
    %c0_2 = arith.constant 0 : index
    %1 = vector.load %arg3[%c0_1, %c0_2] : memref<1x256xf32, #tpu.memory_space<vmem>>, vector<1x256xf32>
    %2 = vector.broadcast %1 : vector<1x256xf32> to vector<2x256xf32>
    %3 = arith.addf %0, %2 : vector<2x256xf32>
    %c0_3 = arith.constant 0 : index
    %c0_4 = arith.constant 0 : index
    %4 = vector.load %arg4[%c0_3, %c0_4] : memref<2x256xf32, #tpu.memory_space<vmem>>, vector<2x256xf32>
    tpu.vector_store %arg4[%c0_3, %c0_4], %3 {strides = array<i32>} : memref<2x256xf32, #tpu.memory_space<vmem>>, vector<2x256xf32>,
    return
  }
  func.func @transform_0(%arg0: i32, %arg1: i32) -> (i32, i32) {
    %c0_i32 = arith.constant 0 : i32
    return %arg1, %arg0 : i32, i32
  }
  func.func @transform_1(%arg0: i32, %arg1: i32) -> (i32, i32) {
    %c0_i32 = arith.constant 0 : i32
    %c0_i32_0 = arith.constant 0 : i32
    return %c0_i32, %arg0 : i32, i32
  }
  func.func @transform_2(%arg0: i32, %arg1: i32) -> (i32, i32) {
    %c0_i32 = arith.constant 0 : i32
    return %arg1, %arg0 : i32, i32
  }
}

</mosaic_0001>

<llo_original>
// kernel: positional_encoding_forward.1
$region0: #{positional_encoding_forward.1}
  #allocation0 [shape = 'u32[]', space=smem, size = 0x4, offset = 0x4, fixed_abs, tag = 'smem constant byte address 0x4 - core index']
  #allocation1 [shape = 'u32[144,128]{1,0:T(1,128)}', space=vmem, size = 0x12000, scoped, tag = 'internal scratch']
  %s0 = inlined_call_operand.vmem [shape: f32[2,256], index: 0, kind: input, shape index: {}]
  %s1 = inlined_call_operand.vmem [shape: f32[1,256], index: 1, kind: input, shape index: {}]
  %s2 = inlined_call_operand.vmem [shape: f32[2,256], index: 2, kind: output, shape index: {}]
  %s3 = sld [smem:[#allocation0]]
  $region18: #{positional_encoding_forward.1} parent=0
    _
  %s5 = ssub.s32 1, %s3
  %s6 = scalar_select 0, %s5, %s3
  // Predicated region
  $region2: #{positional_encoding_forward.1} parent=0 // pred_check
    _
  $region3: #{positional_encoding_forward.1} parent=0 // pred_check_branch
    %8 = sbr.rel (0) target = $region5
  $region4: #{positional_encoding_forward.1} parent=0 // pred_region
    _
  $region5: #{positional_encoding_forward.1} parent=0 // pred_fallthru
    _
  // Predicated region
  $region6: #{positional_encoding_forward.1} parent=0 // pred_check
    _
  $region7: #{positional_encoding_forward.1} parent=0 // pred_check_branch
    %10 = sbr.rel (0) target = $region9
  $region8: #{positional_encoding_forward.1} parent=0 // pred_region
    _
  $region9: #{positional_encoding_forward.1} parent=0 // pred_fallthru
    _
  %v11 = vld [vmem:[%s0] sm:$0xf]
  %v12 = vld [vmem:[%s1] sm:$0x3]
  %v14 = vlaneseq
  %v15 = vshrl.u32 %v14, 7
  %v16 = vsub.s32 0, %v15
  %v17 = vrot.slane %v12, %v16
  %v18 = vlaneseq
  %v19 = vshrl.u32 %v18, 7
  %v20 = vsub.s32 1, %v19
  %v21 = vrot.slane %v12, %v20
  %v22 = vcombine.low %v17, %v21
  %v24 = vunpack.c.l.s4 1983009808
  %v25 = vunpack.c.0.s8 %v24
  %v26 = vlaneseq
  %v27 = vshrl.u32 %v26, 7
  %v28 = vsub.s32 %v25, %v27
  %v29 = vrot.slane %v22, %v28
  %v31 = vadd.f32 %v11, %v29
  %32 = vst [vmem:[%s2] sm:$0xf] %v31
  // Predicated region
  $region10: #{positional_encoding_forward.1} parent=0 // pred_check
    _
  $region11: #{positional_encoding_forward.1} parent=0 // pred_check_branch
    %34 = sbr.rel (0) target = $region13
  $region12: #{positional_encoding_forward.1} parent=0 // pred_region
    _
  $region13: #{positional_encoding_forward.1} parent=0 // pred_fallthru
    _
  // Predicated region
  $region14: #{positional_encoding_forward.1} parent=0 // pred_check
    _
  $region15: #{positional_encoding_forward.1} parent=0 // pred_check_branch
    %36 = sbr.rel (0) target = $region17
  $region16: #{positional_encoding_forward.1} parent=0 // pred_region
    _
  $region17: #{positional_encoding_forward.1} parent=0 // pred_fallthru
    _

</llo_original>
